<compile_context>
chip_gen: v7x
topology: tpu7x:2x2x1
jax: 0.10.0
libtpu: 0.0.40
codegen_flags: <defaults>
</compile_context>

<pallas_src>
import functools

import jax
import jax.numpy as jnp
from jax.experimental import pallas as pl
from jax.experimental.pallas import tpu as pltpu


def _round_up(x, m):
    return ((x + m - 1) // m) * m


def _mlp_kernel(x_ref, w1_ref, b1_ref, w2_ref, b2_ref, o_ref, *, use_softmax):
    # MXU operands in bf16, accumulation in f32; elementwise math in f32.
    # The cast is a no-op if the producer already hands us bf16 features.
    x = x_ref[...].astype(jnp.bfloat16)

    # Linear 1 + ReLU   (w1 already bf16; b1 is (1, H) f32 -> broadcast)
    h = jnp.dot(x, w1_ref[...], preferred_element_type=jnp.float32)
    h = jnp.maximum(h + b1_ref[...], 0.0)

    # Linear 2          (w2 already bf16; b2 is (1, D_out) f32)
    out = jnp.dot(h.astype(jnp.bfloat16), w2_ref[...],
                  preferred_element_type=jnp.float32)
    out = out + b2_ref[...]

    if use_softmax:
        # Numerically stable softmax over the feature (lane) axis; the approx
        # reciprocal runs on the otherwise-idle EUP slot.
        m = jnp.max(out, axis=-1, keepdims=True)
        e = jnp.exp(out - m)
        out = e * pl.reciprocal(jnp.sum(e, axis=-1, keepdims=True), approx=True)

    o_ref[...] = out.astype(o_ref.dtype)


def concat_fusion_forward(features, w1, b1, w2, b2, *, use_softmax=False,
                          batch_tile=2048, out_dtype=None):
    """features: [B, D_in] (f32 or bf16). Returns [B, D_out] in `out_dtype`
    (defaults to features.dtype, matching the PyTorch module's f32 output).
    Pass out_dtype=jnp.bfloat16 if the consumer allows -- it halves the
    dominant HBM write."""
    B, D_in = features.shape
    H = w1.shape[1]
    D_out = w2.shape[1]
    out_dtype = features.dtype if out_dtype is None else out_dtype

    # Weights in bf16 (MXU-native, halves their HBM/VMEM footprint); biases f32.
    w1 = w1.astype(jnp.bfloat16)
    w2 = w2.astype(jnp.bfloat16)
    b1 = b1.astype(jnp.float32).reshape(1, H)
    b2 = b2.astype(jnp.float32).reshape(1, D_out)

    # --- Batch tile selection -------------------------------------------------
    #  * multiple of 128 (full MXU row fill, sublane-aligned),
    #  * capped at round_up(B, 128) so tiny batches don't compute on air,
    #  * capped at round_up(cdiv(B, 2), 128) once B >= 256 so the grid has at
    #    least 2 steps and the "parallel" axis shards across v7x's two TCs.
    # Ragged last block: handled by Pallas partial-block masking (no wrapper
    # pad / slice copies); garbage tail rows never reach HBM.
    bt = _round_up(max(int(batch_tile), 128), 128)
    bt = min(bt, _round_up(B, 128))
    if B >= 256:
        bt = min(bt, _round_up(pl.cdiv(B, 2), 128))
    grid = (pl.cdiv(B, bt),)

    x_bytes = jnp.dtype(features.dtype).itemsize
    out_bytes = jnp.dtype(out_dtype).itemsize

    # Rough per-step VMEM budget: double-buffered x / out tiles, resident bf16
    # weights (double-buffered by default), and whole-tile f32 intermediates
    # (h, logits, exp).  2x headroom, floored at 32 MiB, capped at 64 MiB so it
    # stays inside v7x's physical VMEM while covering v5e's 16 MiB default.
    per_step = (2 * bt * D_in * x_bytes
                + 2 * bt * D_out * out_bytes
                + bt * (H * 4 + H * 2 + 3 * D_out * 4 + D_in * 2)
                + 4 * (D_in * H + H * D_out) + 8 * (H + D_out))
    vmem_limit = int(min(64 << 20, max(32 << 20, 2 * per_step)))

    cost = pl.CostEstimate(
        flops=2 * B * (D_in * H + H * D_out),
        transcendentals=(B * D_out) if use_softmax else 0,
        bytes_accessed=(B * D_in * x_bytes + B * D_out * out_bytes
                        + 2 * (D_in * H + H * D_out) + 4 * (H + D_out)),
    )

    kernel = functools.partial(_mlp_kernel, use_softmax=use_softmax)

    out = pl.pallas_call(
        kernel,
        out_shape=jax.ShapeDtypeStruct((B, D_out), out_dtype),
        grid_spec=pltpu.PrefetchScalarGridSpec(
            num_scalar_prefetch=0,
            grid=grid,
            in_specs=[
                pl.BlockSpec((bt, D_in), lambda i: (i, 0)),   # x tile
                pl.BlockSpec((D_in, H), lambda i: (0, 0)),    # W1 (resident, bf16)
                pl.BlockSpec((1, H), lambda i: (0, 0)),       # b1 (f32)
                pl.BlockSpec((H, D_out), lambda i: (0, 0)),   # W2 (resident, bf16)
                pl.BlockSpec((1, D_out), lambda i: (0, 0)),   # b2 (f32)
            ],
            out_specs=pl.BlockSpec((bt, D_out), lambda i: (i, 0)),
        ),
        compiler_params=pltpu.CompilerParams(
            # batch axis is independent -> shardable across v7x's two TCs
            dimension_semantics=("parallel",),
            vmem_limit_bytes=vmem_limit),
        cost_estimate=cost,
    )(features, w1, b1, w2, b2)

    return out


def _reference(features, w1, b1, w2, b2, *, use_softmax, bf16_operands):
    """Pure-JAX reference; bf16_operands matches the kernel's MXU rounding."""
    if bf16_operands:
        h = jnp.maximum(
            jnp.dot(features.astype(jnp.bfloat16), w1.astype(jnp.bfloat16),
                    preferred_element_type=jnp.float32) + b1, 0.0)
        out = jnp.dot(h.astype(jnp.bfloat16), w2.astype(jnp.bfloat16),
                      preferred_element_type=jnp.float32) + b2
    else:
        out = jnp.maximum(features @ w1 + b1, 0.0) @ w2 + b2
    return jax.nn.softmax(out, axis=-1) if use_softmax else out


if __name__ == "__main__":
    # Module config (input_dim is a 3-tuple: img, ev, imu feature dims).
    # The concatenation itself happens upstream; this module sees [B, D_in].
    img_in, ev_in, imu_in = 16, 8, 8
    D_in = img_in + ev_in + imu_in          # 32
    hidden = 128
    output_dim = 256

    key = jax.random.PRNGKey(0)
    k_x, k_w1, k_b1, k_w2, k_b2, k_x2 = jax.random.split(key, 6)

    # Deterministic parameter init (xavier-normal-like scaling), synthetic.
    w1 = jax.random.normal(k_w1, (D_in, hidden), jnp.float32) * (
        (2.0 / (D_in + hidden)) ** 0.5)
    b1 = jax.random.normal(k_b1, (1, hidden), jnp.float32) * 0.01
    w2 = jax.random.normal(k_w2, (hidden, output_dim), jnp.float32) * (
        (2.0 / (hidden + output_dim)) ** 0.5)
    b2 = jax.random.normal(k_b2, (1, output_dim), jnp.float32) * 0.01

    # ---- Case 1: tiny batch (B=10): single partial block, no pad/slice copies.
    batch = 10
    features = jax.random.normal(k_x, (batch, D_in), jnp.float32)

    out = jax.block_until_ready(
        concat_fusion_forward(features, w1, b1, w2, b2, use_softmax=False))
    out_sm = jax.block_until_ready(
        concat_fusion_forward(features, w1, b1, w2, b2, use_softmax=True))

    ref_bf16 = _reference(features, w1, b1, w2, b2,
                          use_softmax=False, bf16_operands=True)
    ref_f32 = _reference(features, w1, b1, w2, b2,
                         use_softmax=False, bf16_operands=False)
    ref_sm = _reference(features, w1, b1, w2, b2,
                        use_softmax=True, bf16_operands=True)

    assert out.shape == (batch, output_dim)
    assert out_sm.shape == (batch, output_dim)
    assert jnp.allclose(out, ref_bf16, atol=1e-3, rtol=1e-3)
    assert jnp.allclose(out, ref_f32, atol=5e-2, rtol=5e-2)
    assert jnp.allclose(out_sm, ref_sm, atol=1e-3, rtol=2e-2)

    # ---- Case 2: B=300: exercises >=2 grid steps (two-TC path) + ragged tail.
    batch2 = 300
    features2 = jax.random.normal(k_x2, (batch2, D_in), jnp.float32)
    out2 = jax.block_until_ready(
        concat_fusion_forward(features2, w1, b1, w2, b2, use_softmax=True))
    ref2 = _reference(features2, w1, b1, w2, b2,
                      use_softmax=True, bf16_operands=True)
    assert out2.shape == (batch2, output_dim)
    assert jnp.allclose(out2, ref2, atol=1e-3, rtol=2e-2)

    # ---- Case 3: bf16 output path (the recommended low-HBM-traffic config).
    out_bf16 = jax.block_until_ready(
        concat_fusion_forward(features, w1, b1, w2, b2, use_softmax=False,
                              out_dtype=jnp.bfloat16))
    assert out_bf16.dtype == jnp.bfloat16
    assert jnp.allclose(out_bf16.astype(jnp.float32), ref_bf16,
                        atol=5e-2, rtol=5e-2)

    print("KERNEL_OK")
</pallas_src>

<mosaic_0001>
module attributes {stable_mosaic.version = 11 : i64} {
  func.func @_mlp_kernel(%arg0: i32, %arg1: memref<128x32xf32, #tpu.memory_space<vmem>>, %arg2: memref<32x128xbf16, #tpu.memory_space<vmem>>, %arg3: memref<1x128xf32, #tpu.memory_space<vmem>>, %arg4: memref<128x256xbf16, #tpu.memory_space<vmem>>, %arg5: memref<1x256xf32, #tpu.memory_space<vmem>>, %arg6: memref<128x256xf32, #tpu.memory_space<vmem>>) attributes {dimension_semantics = [#tpu.dimension_semantics<parallel>], iteration_bounds = array<i64: 1>, scalar_prefetch = 0 : i64, scratch_operands = 0 : i64, tpu.core_type = #tpu.core_type<tc>, window_params = [{transform_indices = @transform_0, window_bounds = array<i64: 128, 32>}, {pipeline_mode = #tpu.pipeline_mode<synchronous>, transform_indices = @transform_1, window_bounds = array<i64: 32, 128>}, {pipeline_mode = #tpu.pipeline_mode<synchronous>, transform_indices = @transform_2, window_bounds = array<i64: 1, 128>}, {pipeline_mode = #tpu.pipeline_mode<synchronous>, transform_indices = @transform_3, window_bounds = array<i64: 128, 256>}, {pipeline_mode = #tpu.pipeline_mode<synchronous>, transform_indices = @transform_4, window_bounds = array<i64: 1, 256>}, {transform_indices = @transform_5, window_bounds = array<i64: 128, 256>}]} {
    %c0 = arith.constant 0 : index
    %c0_0 = arith.constant 0 : index
    %0 = vector.load %arg1[%c0, %c0_0] : memref<128x32xf32, #tpu.memory_space<vmem>>, vector<128x32xf32>
    %1 = arith.truncf %0 : vector<128x32xf32> to vector<128x32xbf16>
    %c0_1 = arith.constant 0 : index
    %c0_2 = arith.constant 0 : index
    %2 = vector.load %arg2[%c0_1, %c0_2] : memref<32x128xbf16, #tpu.memory_space<vmem>>, vector<32x128xbf16>
    %cst = arith.constant dense<0.000000e+00> : vector<128x128xf32>
    %3 = tpu.matmul %1, %2, %cst {dimension_numbers = #tpu.dot_dimension_numbers<[1], [0], [0], [1], [0, 0, 1, 1], [], []>} : vector<128x32xbf16>, vector<32x128xbf16>, vector<128x128xf32> -> vector<128x128xf32>
    %c0_3 = arith.constant 0 : index
    %c0_4 = arith.constant 0 : index
    %4 = vector.load %arg3[%c0_3, %c0_4] : memref<1x128xf32, #tpu.memory_space<vmem>>, vector<1x128xf32>
    %5 = vector.broadcast %4 : vector<1x128xf32> to vector<128x128xf32>
    %6 = arith.addf %3, %5 : vector<128x128xf32>
    %cst_5 = arith.constant 0.000000e+00 : f32
    %7 = vector.broadcast %cst_5 : f32 to vector<128x128xf32>
    %8 = arith.maximumf %6, %7 : vector<128x128xf32>
    %9 = arith.truncf %8 : vector<128x128xf32> to vector<128x128xbf16>
    %c0_6 = arith.constant 0 : index
    %c0_7 = arith.constant 0 : index
    %10 = vector.load %arg4[%c0_6, %c0_7] : memref<128x256xbf16, #tpu.memory_space<vmem>>, vector<128x256xbf16>
    %cst_8 = arith.constant dense<0.000000e+00> : vector<128x256xf32>
    %11 = tpu.matmul %9, %10, %cst_8 {dimension_numbers = #tpu.dot_dimension_numbers<[1], [0], [0], [1], [0, 0, 1, 1], [], []>} : vector<128x128xbf16>, vector<128x256xbf16>, vector<128x256xf32> -> vector<128x256xf32>
    %c0_9 = arith.constant 0 : index
    %c0_10 = arith.constant 0 : index
    %12 = vector.load %arg5[%c0_9, %c0_10] : memref<1x256xf32, #tpu.memory_space<vmem>>, vector<1x256xf32>
    %13 = vector.broadcast %12 : vector<1x256xf32> to vector<128x256xf32>
    %14 = arith.addf %11, %13 : vector<128x256xf32>
    %c0_11 = arith.constant 0 : index
    %c0_12 = arith.constant 0 : index
    %15 = vector.load %arg6[%c0_11, %c0_12] : memref<128x256xf32, #tpu.memory_space<vmem>>, vector<128x256xf32>
    tpu.vector_store %arg6[%c0_11, %c0_12], %14 {strides = array<i32>} : memref<128x256xf32, #tpu.memory_space<vmem>>, vector<128x256xf32>,
    return
  }
  func.func @transform_0(%arg0: i32) -> (i32, i32) {
    %c0_i32 = arith.constant 0 : i32
    %c0_i32_0 = arith.constant 0 : i32
    return %arg0, %c0_i32 : i32, i32
  }
  func.func @transform_1(%arg0: i32) -> (i32, i32) {
    %c0_i32 = arith.constant 0 : i32
    %c0_i32_0 = arith.constant 0 : i32
    %c0_i32_1 = arith.constant 0 : i32
    return %c0_i32, %c0_i32_0 : i32, i32
  }
  func.func @transform_2(%arg0: i32) -> (i32, i32) {
    %c0_i32 = arith.constant 0 : i32
    %c0_i32_0 = arith.constant 0 : i32
    %c0_i32_1 = arith.constant 0 : i32
    return %c0_i32, %c0_i32_0 : i32, i32
  }
  func.func @transform_3(%arg0: i32) -> (i32, i32) {
    %c0_i32 = arith.constant 0 : i32
    %c0_i32_0 = arith.constant 0 : i32
    %c0_i32_1 = arith.constant 0 : i32
    return %c0_i32, %c0_i32_0 : i32, i32
  }
  func.func @transform_4(%arg0: i32) -> (i32, i32) {
    %c0_i32 = arith.constant 0 : i32
    %c0_i32_0 = arith.constant 0 : i32
    %c0_i32_1 = arith.constant 0 : i32
    return %c0_i32, %c0_i32_0 : i32, i32
  }
  func.func @transform_5(%arg0: i32) -> (i32, i32) {
    %c0_i32 = arith.constant 0 : i32
    %c0_i32_0 = arith.constant 0 : i32
    return %arg0, %c0_i32 : i32, i32
  }
}

</mosaic_0001>

<llo_original>
// kernel: tpu_custom_call.1
$region0: #{tpu_custom_call.1}
  #allocation0 [shape = 'u32[]', space=smem, size = 0x4, offset = 0x4, fixed_abs, tag = 'smem constant byte address 0x4 - core index']
  #allocation1 [shape = 'u32[144,128]{1,0:T(1,128)}', space=vmem, size = 0x12000, scoped, tag = 'internal scratch']
  %s0 = inlined_call_operand.hbm [shape: f32[10,32], index: 0, kind: input, shape index: {}]
  %s1 = inlined_call_operand.hbm [shape: bf16[32,128], index: 1, kind: input, shape index: {}]
  %s2 = inlined_call_operand.vmem [shape: f32[1,128], index: 2, kind: input, shape index: {}]
  %s3 = inlined_call_operand.hbm [shape: bf16[128,256], index: 3, kind: input, shape index: {}]
  %s4 = inlined_call_operand.vmem [shape: f32[1,256], index: 4, kind: input, shape index: {}]
  %s5 = inlined_call_operand.hbm [shape: f32[10,256], index: 5, kind: output, shape index: {}]
  %s6 = sld [smem:[#allocation0]]
  $region42: #{tpu_custom_call.1} parent=0
    _
  %s8 = ssub.s32 1, %s6
  %s9 = scalar_select 0, %s8, %s6
  $region1: #{tpu_custom_call.1} parent=0
    #allocation2 [shape = 'u8[65536]{0}', space=vmem, size = 0x10000, scoped, tag = 'input window, operand 0, single buffered']
    #allocation3 [shape = 's32[1]{0}', space=sflag, size = 0x4, scoped, tag = 'scoped memory for tpu_custom_call.1']
    #allocation4 [shape = 's32[1]{0}', space=sflag, size = 0x4, scoped, tag = 'scoped memory for tpu_custom_call.1']
    #allocation5 [shape = 'u8[8192]{0}', space=vmem, size = 0x2000, scoped, tag = 'input window, operand 1, single buffered']
    #allocation6 [shape = 's32[1]{0}', space=sflag, size = 0x4, scoped, tag = 'scoped memory for tpu_custom_call.1']
    #allocation7 [shape = 'u8[65536]{0}', space=vmem, size = 0x10000, scoped, tag = 'input window, operand 3, single buffered']
    #allocation8 [shape = 'u8[131072]{0}', space=vmem, size = 0x20000, scoped, tag = 'output window, operand 0, single buffered']
    %10 = vsyncpa [#allocation3], 0
    %11 = vsyncpa [#allocation6], 0
    %12 = vsyncpa [#allocation4], 0
    // Predicated region
    $region2: #{tpu_custom_call.1} parent=1 // pred_check
      _
    $region3: #{tpu_custom_call.1} parent=1 // pred_check_branch
      %14 = sbr.rel (0) target = $region5
    $region4: #{tpu_custom_call.1} parent=1 // pred_region
      %s16 = ssub.s32 2048, 256
      %17 = vsyncadd [#allocation3], %s16
      %s18 = sshll.u32 [#allocation2], 4
      %s19 = int_to_ptr.vmem [resolvable:$true] %s18
      %24 = dma.hbm_to_vmem [thread:$0]  %s0, 256, %s19, [#allocation3], 128, 128, 8
    $region5: #{tpu_custom_call.1} parent=1 // pred_fallthru
      _
    // Predicated region
    $region6: #{tpu_custom_call.1} parent=1 // pred_check
      _
    $region7: #{tpu_custom_call.1} parent=1 // pred_check_branch
      %26 = sbr.rel (0) target = $region9
    $region8: #{tpu_custom_call.1} parent=1 // pred_region
      %s28 = ssub.s32 256, 256
      %29 = vsyncadd [#allocation6], %s28
      %s30 = sshll.u32 [#allocation5], 4
      %s31 = int_to_ptr.vmem [resolvable:$true] %s30
      %36 = dma.hbm_to_vmem [thread:$0]  %s1, 256, %s31, [#allocation6], 64, 64, 4
    $region9: #{tpu_custom_call.1} parent=1 // pred_fallthru
      _
    // Predicated region
    $region10: #{tpu_custom_call.1} parent=1 // pred_check
      _
    $region11: #{tpu_custom_call.1} parent=1 // pred_check_branch
      %38 = sbr.rel (0) target = $region13
    $region12: #{tpu_custom_call.1} parent=1 // pred_region
      _
    $region13: #{tpu_custom_call.1} parent=1 // pred_fallthru
      _
    // Predicated region
    $region14: #{tpu_custom_call.1} parent=1 // pred_check
      _
    $region15: #{tpu_custom_call.1} parent=1 // pred_check_branch
      %40 = sbr.rel (0) target = $region17
    $region16: #{tpu_custom_call.1} parent=1 // pred_region
      %s42 = ssub.s32 2048, 2048
      %43 = vsyncadd [#allocation6], %s42
      %s44 = sshll.u32 [#allocation7], 4
      %s45 = int_to_ptr.vmem [resolvable:$true] %s44
      %50 = dma.hbm_to_vmem [thread:$0]  %s3, 2048, %s45, [#allocation6], 128, 128, 8
    $region17: #{tpu_custom_call.1} parent=1 // pred_fallthru
      _
    // Predicated region
    $region18: #{tpu_custom_call.1} parent=1 // pred_check
      _
    $region19: #{tpu_custom_call.1} parent=1 // pred_check_branch
      %52 = sbr.rel (0) target = $region21
    $region20: #{tpu_custom_call.1} parent=1 // pred_region
      _
    $region21: #{tpu_custom_call.1} parent=1 // pred_fallthru
      _
    // Predicated region
    $region22: #{tpu_custom_call.1} parent=1 // pred_check
      _
    $region23: #{tpu_custom_call.1} parent=1 // pred_check_branch
      %54 = sbr.rel (0) target = $region25
    $region24: #{tpu_custom_call.1} parent=1 // pred_region
      %55 = dma.done [#allocation3], 2048
    $region25: #{tpu_custom_call.1} parent=1 // pred_fallthru
      _
    // Predicated region
    $region26: #{tpu_custom_call.1} parent=1 // pred_check
      _
    $region27: #{tpu_custom_call.1} parent=1 // pred_check_branch
      %57 = sbr.rel (0) target = $region29
    $region28: #{tpu_custom_call.1} parent=1 // pred_region
      %58 = dma.done [#allocation6], 256
    $region29: #{tpu_custom_call.1} parent=1 // pred_fallthru
      _
    // Predicated region
    $region30: #{tpu_custom_call.1} parent=1 // pred_check
      _
    $region31: #{tpu_custom_call.1} parent=1 // pred_check_branch
      %60 = sbr.rel (0) target = $region33
    $region32: #{tpu_custom_call.1} parent=1 // pred_region
      %61 = dma.done [#allocation6], 2048
    $region33: #{tpu_custom_call.1} parent=1 // pred_fallthru
      _
    %v63 = vld [vmem:[#allocation2] sm:$0xff]
    %v64 = vld [vmem:[#allocation2 + $0x8] sm:$0xff]
    %v65 = vld [vmem:[#allocation2 + $0x10] sm:$0xff]
    %v66 = vld [vmem:[#allocation2 + $0x18] sm:$0xff]
    %v67 = vld [vmem:[#allocation2 + $0x20] sm:$0xff]
    %v68 = vld [vmem:[#allocation2 + $0x28] sm:$0xff]
    %v69 = vld [vmem:[#allocation2 + $0x30] sm:$0xff]
    %v70 = vld [vmem:[#allocation2 + $0x38] sm:$0xff]
    %v71 = vld [vmem:[#allocation2 + $0x40] sm:$0xff]
    %v72 = vld [vmem:[#allocation2 + $0x48] sm:$0xff]
    %v73 = vld [vmem:[#allocation2 + $0x50] sm:$0xff]
    %v74 = vld [vmem:[#allocation2 + $0x58] sm:$0xff]
    %v75 = vld [vmem:[#allocation2 + $0x60] sm:$0xff]
    %v76 = vld [vmem:[#allocation2 + $0x68] sm:$0xff]
    %v77 = vld [vmem:[#allocation2 + $0x70] sm:$0xff]
    %v78 = vld [vmem:[#allocation2 + $0x78] sm:$0xff]
    %v79 = vpack.c.bf16 %v64, %v63
    %v80 = vpack.c.bf16 %v66, %v65
    %v81 = vpack.c.bf16 %v68, %v67
    %v82 = vpack.c.bf16 %v70, %v69
    %v83 = vpack.c.bf16 %v72, %v71
    %v84 = vpack.c.bf16 %v74, %v73
    %v85 = vpack.c.bf16 %v76, %v75
    %v86 = vpack.c.bf16 %v78, %v77
    %v87 = vld [vmem:[#allocation5] sm:$0xf]
    %v88 = vld [vmem:[#allocation5 + $0x4] sm:$0xf]
    %v89 = vld [vmem:[#allocation5 + $0x8] sm:$0xf]
    %v90 = vld [vmem:[#allocation5 + $0xc] sm:$0xf]
    %v91 = vld [vmem:[%s2] sm:$0x1]
    %v93 = vlaneseq
    %v94 = vshrl.u32 %v93, 7
    %v95 = vsub.s32 0, %v94
    %v96 = vrot.slane %v91, %v95
    %v102 = vunpack.c.l.b16 %v87
    %v103 = vunpack.c.l.b16 %v88
    %v104 = vunpack.c.l.b16 %v89
    %v105 = vunpack.c.l.b16 %v90
    %v106 = vpack.c.b16 %v103, %v102
    %v107 = vpack.c.b16 %v105, %v104
    %vm110 = vcmask 261120
    %v112 = vsel %vm110, %v79, 0
    %v115 = vsel %vm110, %v80, 0
    %v118 = vsel %vm110, %v81, 0
    %v121 = vsel %vm110, %v82, 0
    %v124 = vsel %vm110, %v83, 0
    %v127 = vsel %vm110, %v84, 0
    %v130 = vsel %vm110, %v85, 0
    %v133 = vsel %vm110, %v86, 0
    %135 = vmatprep.subr.bf16.mxu0 0
    %136 = vmatpush1.bf16.msra.mxu0 %v106
    %137 = vmatprep.subr.bf16.mxu0 0
    %138 = vmatpush1.bf16.msra.mxu0 %v107
    %139 = vmatprep.subr.bf16.mxu0 0
    %140 = vmatpush1.bf16.msra.mxu0 0
    %141 = vmatprep.subr.bf16.mxu0 0
    %142 = vmatpush1.bf16.msra.mxu0 0
    %143 = vmatprep.subr.bf16.mxu0 0
    %144 = vmatpush1.bf16.msra.mxu0 0
    %145 = vmatprep.subr.bf16.mxu0 0
    %146 = vmatpush1.bf16.msra.mxu0 0
    %147 = vmatprep.subr.bf16.mxu0 0
    %148 = vmatpush1.bf16.msra.mxu0 0
    %149 = vmatprep.subr.bf16.mxu0 0
    %150 = vmatpush1.bf16.msra.mxu0 0
    %151 = vmatprep.subr.bf16.mxu0 0
    %152 = vmatpush1.bf16.msra.mxu0 0
    %153 = vmatprep.subr.bf16.mxu0 0
    %154 = vmatpush1.bf16.msra.mxu0 0
    %155 = vmatprep.subr.bf16.mxu0 0
    %156 = vmatpush1.bf16.msra.mxu0 0
    %157 = vmatprep.subr.bf16.mxu0 0
    %158 = vmatpush1.bf16.msra.mxu0 0
    %159 = vmatprep.subr.bf16.mxu0 0
    %160 = vmatpush1.bf16.msra.mxu0 0
    %161 = vmatprep.subr.bf16.mxu0 0
    %162 = vmatpush1.bf16.msra.mxu0 0
    %163 = vmatprep.subr.bf16.mxu0 0
    %164 = vmatpush1.bf16.msra.mxu0 0
    %165 = vmatprep.subr.bf16.mxu0 0
    %166 = vmatpush1.bf16.msra.mxu0 0
    %167 = vmatprep.mubr.bf16.mxu0 0
    %168 = vmatmul.mubr.bf16.gmra.mrb[0].mxu0 %v112
    %v169 = vpop.f32.mrb[0].mxu0
    %v170 = vadd.f32 %v96, %v169
    %v171 = vpop.f32.mrb[0].mxu0
    %v172 = vpop.f32.mrb[0].mxu0
    %v173 = vadd.f32 %v96, %v172
    %v174 = vpop.f32.mrb[0].mxu0
    %175 = vmatprep.mubr.bf16.mxu0 0
    %176 = vmatmul.mubr.bf16.gmra.mrb[0].mxu0 %v115
    %v177 = vpop.f32.mrb[0].mxu0
    %v178 = vadd.f32 %v96, %v177
    %v179 = vpop.f32.mrb[0].mxu0
    %v180 = vpop.f32.mrb[0].mxu0
    %v181 = vadd.f32 %v96, %v180
    %v182 = vpop.f32.mrb[0].mxu0
    %183 = vmatprep.mubr.bf16.mxu0 0
    %184 = vmatmul.mubr.bf16.gmra.mrb[0].mxu0 %v118
    %v185 = vpop.f32.mrb[0].mxu0
    %v186 = vadd.f32 %v96, %v185
    %v187 = vpop.f32.mrb[0].mxu0
    %v188 = vpop.f32.mrb[0].mxu0
    %v189 = vadd.f32 %v96, %v188
    %v190 = vpop.f32.mrb[0].mxu0
    %191 = vmatprep.mubr.bf16.mxu0 0
    %192 = vmatmul.mubr.bf16.gmra.mrb[0].mxu0 %v121
    %v193 = vpop.f32.mrb[0].mxu0
    %v194 = vadd.f32 %v96, %v193
    %v195 = vpop.f32.mrb[0].mxu0
    %v196 = vpop.f32.mrb[0].mxu0
    %v197 = vadd.f32 %v96, %v196
    %v198 = vpop.f32.mrb[0].mxu0
    %199 = vmatprep.mubr.bf16.mxu0 0
    %200 = vmatmul.mubr.bf16.gmra.mrb[0].mxu0 %v124
    %v201 = vpop.f32.mrb[0].mxu0
    %v202 = vadd.f32 %v96, %v201
    %v203 = vpop.f32.mrb[0].mxu0
    %v204 = vpop.f32.mrb[0].mxu0
    %v205 = vadd.f32 %v96, %v204
    %v206 = vpop.f32.mrb[0].mxu0
    %207 = vmatprep.mubr.bf16.mxu0 0
    %208 = vmatmul.mubr.bf16.gmra.mrb[0].mxu0 %v127
    %v209 = vpop.f32.mrb[0].mxu0
    %v210 = vadd.f32 %v96, %v209
    %v211 = vpop.f32.mrb[0].mxu0
    %v212 = vpop.f32.mrb[0].mxu0
    %v213 = vadd.f32 %v96, %v212
    %v214 = vpop.f32.mrb[0].mxu0
    %215 = vmatprep.mubr.bf16.mxu0 0
    %216 = vmatmul.mubr.bf16.gmra.mrb[0].mxu0 %v130
    %v217 = vpop.f32.mrb[0].mxu0
    %v218 = vadd.f32 %v96, %v217
    %v219 = vpop.f32.mrb[0].mxu0
    %v220 = vpop.f32.mrb[0].mxu0
    %v221 = vadd.f32 %v96, %v220
    %v222 = vpop.f32.mrb[0].mxu0
    %223 = vmatprep.mubr.bf16.mxu0 0
    %224 = vmatmul.mubr.bf16.gmra.mrb[0].mxu0 %v133
    %v225 = vpop.f32.mrb[0].mxu0
    %v226 = vadd.f32 %v96, %v225
    %v227 = vpop.f32.mrb[0].mxu0
    %v228 = vpop.f32.mrb[0].mxu0
    %v229 = vadd.f32 %v96, %v228
    %v230 = vpop.f32.mrb[0].mxu0
    %231 = vdwg.mxu0
    %v232 = vmax.f32 %v170, 0.0
    %v233 = vmax.f32 %v173, 0.0
    %v234 = vmax.f32 %v178, 0.0
    %v235 = vmax.f32 %v181, 0.0
    %v236 = vmax.f32 %v186, 0.0
    %v237 = vmax.f32 %v189, 0.0
    %v238 = vmax.f32 %v194, 0.0
    %v239 = vmax.f32 %v197, 0.0
    %v240 = vmax.f32 %v202, 0.0
    %v241 = vmax.f32 %v205, 0.0
    %v242 = vmax.f32 %v210, 0.0
    %v243 = vmax.f32 %v213, 0.0
    %v244 = vmax.f32 %v218, 0.0
    %v245 = vmax.f32 %v221, 0.0
    %v246 = vmax.f32 %v226, 0.0
    %v247 = vmax.f32 %v229, 0.0
    %v248 = vpack.c.bf16 %v233, %v232
    %v249 = vpack.c.bf16 %v235, %v234
    %v250 = vpack.c.bf16 %v237, %v236
    %v251 = vpack.c.bf16 %v239, %v238
    %v252 = vpack.c.bf16 %v241, %v240
    %v253 = vpack.c.bf16 %v243, %v242
    %v254 = vpack.c.bf16 %v245, %v244
    %v255 = vpack.c.bf16 %v247, %v246
    %v256 = vld [vmem:[#allocation7] sm:$0xff]
    %v257 = vld [vmem:[#allocation7 + $0x8] sm:$0xff]
    %v258 = vld [vmem:[#allocation7 + $0x10] sm:$0xff]
    %v259 = vld [vmem:[#allocation7 + $0x18] sm:$0xff]
    %v260 = vld [vmem:[#allocation7 + $0x20] sm:$0xff]
    %v261 = vld [vmem:[#allocation7 + $0x28] sm:$0xff]
    %v262 = vld [vmem:[#allocation7 + $0x30] sm:$0xff]
    %v263 = vld [vmem:[#allocation7 + $0x38] sm:$0xff]
    %v264 = vld [vmem:[#allocation7 + $0x40] sm:$0xff]
    %v265 = vld [vmem:[#allocation7 + $0x48] sm:$0xff]
    %v266 = vld [vmem:[#allocation7 + $0x50] sm:$0xff]
    %v267 = vld [vmem:[#allocation7 + $0x58] sm:$0xff]
    %v268 = vld [vmem:[#allocation7 + $0x60] sm:$0xff]
    %v269 = vld [vmem:[#allocation7 + $0x68] sm:$0xff]
    %v270 = vld [vmem:[#allocation7 + $0x70] sm:$0xff]
    %v271 = vld [vmem:[#allocation7 + $0x78] sm:$0xff]
    %v272 = vld [vmem:[%s4] sm:$0x3]
    %v274 = vlaneseq
    %v275 = vshrl.u32 %v274, 7
    %v276 = vsub.s32 0, %v275
    %v277 = vrot.slane %v272, %v276
    %v278 = vlaneseq
    %v279 = vshrl.u32 %v278, 7
    %v280 = vsub.s32 1, %v279
    %v281 = vrot.slane %v272, %v280
    %v300 = vunpack.c.l.b16 %v256
    %v301 = vunpack.c.h.b16 %v256
    %v302 = vunpack.c.l.b16 %v257
    %v303 = vunpack.c.h.b16 %v257
    %v304 = vunpack.c.l.b16 %v258
    %v305 = vunpack.c.h.b16 %v258
    %v306 = vunpack.c.l.b16 %v259
    %v307 = vunpack.c.h.b16 %v259
    %v308 = vunpack.c.l.b16 %v260
    %v309 = vunpack.c.h.b16 %v260
    %v310 = vunpack.c.l.b16 %v261
    %v311 = vunpack.c.h.b16 %v261
    %v312 = vunpack.c.l.b16 %v262
    %v313 = vunpack.c.h.b16 %v262
    %v314 = vunpack.c.l.b16 %v263
    %v315 = vunpack.c.h.b16 %v263
    %v316 = vunpack.c.l.b16 %v264
    %v317 = vunpack.c.h.b16 %v264
    %v318 = vunpack.c.l.b16 %v265
    %v319 = vunpack.c.h.b16 %v265
    %v320 = vunpack.c.l.b16 %v266
    %v321 = vunpack.c.h.b16 %v266
    %v322 = vunpack.c.l.b16 %v267
    %v323 = vunpack.c.h.b16 %v267
    %v324 = vunpack.c.l.b16 %v268
    %v325 = vunpack.c.h.b16 %v268
    %v326 = vunpack.c.l.b16 %v269
    %v327 = vunpack.c.h.b16 %v269
    %v328 = vunpack.c.l.b16 %v270
    %v329 = vunpack.c.h.b16 %v270
    %v330 = vunpack.c.l.b16 %v271
    %v331 = vunpack.c.h.b16 %v271
    %v332 = vpack.c.b16 %v302, %v300
    %v333 = vpack.c.b16 %v303, %v301
    %v334 = vpack.c.b16 %v306, %v304
    %v335 = vpack.c.b16 %v307, %v305
    %v336 = vpack.c.b16 %v310, %v308
    %v337 = vpack.c.b16 %v311, %v309
    %v338 = vpack.c.b16 %v314, %v312
    %v339 = vpack.c.b16 %v315, %v313
    %v340 = vpack.c.b16 %v318, %v316
    %v341 = vpack.c.b16 %v319, %v317
    %v342 = vpack.c.b16 %v322, %v320
    %v343 = vpack.c.b16 %v323, %v321
    %v344 = vpack.c.b16 %v326, %v324
    %v345 = vpack.c.b16 %v327, %v325
    %v346 = vpack.c.b16 %v330, %v328
    %v347 = vpack.c.b16 %v331, %v329
    %364 = vmatprep.subr.bf16.mxu0 %v333
    %365 = vmatpush1.bf16.msra.mxu0 %v332
    %366 = vmatprep.subr.bf16.mxu0 %v335
    %367 = vmatpush1.bf16.msra.mxu0 %v334
    %368 = vmatprep.subr.bf16.mxu0 %v337
    %369 = vmatpush1.bf16.msra.mxu0 %v336
    %370 = vmatprep.subr.bf16.mxu0 %v339
    %371 = vmatpush1.bf16.msra.mxu0 %v338
    %372 = vmatprep.subr.bf16.mxu0 %v341
    %373 = vmatpush1.bf16.msra.mxu0 %v340
    %374 = vmatprep.subr.bf16.mxu0 %v343
    %375 = vmatpush1.bf16.msra.mxu0 %v342
    %376 = vmatprep.subr.bf16.mxu0 %v345
    %377 = vmatpush1.bf16.msra.mxu0 %v344
    %378 = vmatprep.subr.bf16.mxu0 %v347
    %379 = vmatpush1.bf16.msra.mxu0 %v346
    %380 = vmatprep.subr.bf16.mxu0 0
    %381 = vmatpush1.bf16.msra.mxu0 0
    %382 = vmatprep.subr.bf16.mxu0 0
    %383 = vmatpush1.bf16.msra.mxu0 0
    %384 = vmatprep.subr.bf16.mxu0 0
    %385 = vmatpush1.bf16.msra.mxu0 0
    %386 = vmatprep.subr.bf16.mxu0 0
    %387 = vmatpush1.bf16.msra.mxu0 0
    %388 = vmatprep.subr.bf16.mxu0 0
    %389 = vmatpush1.bf16.msra.mxu0 0
    %390 = vmatprep.subr.bf16.mxu0 0
    %391 = vmatpush1.bf16.msra.mxu0 0
    %392 = vmatprep.subr.bf16.mxu0 0
    %393 = vmatpush1.bf16.msra.mxu0 0
    %394 = vmatprep.subr.bf16.mxu0 0
    %395 = vmatpush1.bf16.msra.mxu0 0
    %396 = vmatprep.mubr.bf16.mxu0 0
    %397 = vmatmul.mubr.bf16.gmra.mrb[0].mxu0 %v248
    %v398 = vpop.f32.mrb[0].mxu0
    %v399 = vadd.f32 %v277, %v398
    %v400 = vpop.f32.mrb[0].mxu0
    %v401 = vadd.f32 %v281, %v400
    %v402 = vpop.f32.mrb[0].mxu0
    %v403 = vadd.f32 %v277, %v402
    %v404 = vpop.f32.mrb[0].mxu0
    %v405 = vadd.f32 %v281, %v404
    %406 = vmatprep.mubr.bf16.mxu0 0
    %407 = vmatmul.mubr.bf16.gmra.mrb[0].mxu0 %v249
    %v408 = vpop.f32.mrb[0].mxu0
    %v409 = vadd.f32 %v277, %v408
    %v410 = vpop.f32.mrb[0].mxu0
    %v411 = vadd.f32 %v281, %v410
    %v412 = vpop.f32.mrb[0].mxu0
    %v413 = vadd.f32 %v277, %v412
    %v414 = vpop.f32.mrb[0].mxu0
    %v415 = vadd.f32 %v281, %v414
    %416 = vmatprep.mubr.bf16.mxu0 0
    %417 = vmatmul.mubr.bf16.gmra.mrb[0].mxu0 %v250
    %v418 = vpop.f32.mrb[0].mxu0
    %v419 = vadd.f32 %v277, %v418
    %v420 = vpop.f32.mrb[0].mxu0
    %v421 = vadd.f32 %v281, %v420
    %v422 = vpop.f32.mrb[0].mxu0
    %v423 = vadd.f32 %v277, %v422
    %v424 = vpop.f32.mrb[0].mxu0
    %v425 = vadd.f32 %v281, %v424
    %426 = vmatprep.mubr.bf16.mxu0 0
    %427 = vmatmul.mubr.bf16.gmra.mrb[0].mxu0 %v251
    %v428 = vpop.f32.mrb[0].mxu0
    %v429 = vadd.f32 %v277, %v428
    %v430 = vpop.f32.mrb[0].mxu0
    %v431 = vadd.f32 %v281, %v430
    %v432 = vpop.f32.mrb[0].mxu0
    %v433 = vadd.f32 %v277, %v432
    %v434 = vpop.f32.mrb[0].mxu0
    %v435 = vadd.f32 %v281, %v434
    %436 = vmatprep.mubr.bf16.mxu0 0
    %437 = vmatmul.mubr.bf16.gmra.mrb[0].mxu0 %v252
    %v438 = vpop.f32.mrb[0].mxu0
    %v439 = vadd.f32 %v277, %v438
    %v440 = vpop.f32.mrb[0].mxu0
    %v441 = vadd.f32 %v281, %v440
    %v442 = vpop.f32.mrb[0].mxu0
    %v443 = vadd.f32 %v277, %v442
    %v444 = vpop.f32.mrb[0].mxu0
    %v445 = vadd.f32 %v281, %v444
    %446 = vmatprep.mubr.bf16.mxu0 0
    %447 = vmatmul.mubr.bf16.gmra.mrb[0].mxu0 %v253
    %v448 = vpop.f32.mrb[0].mxu0
    %v449 = vadd.f32 %v277, %v448
    %v450 = vpop.f32.mrb[0].mxu0
    %v451 = vadd.f32 %v281, %v450
    %v452 = vpop.f32.mrb[0].mxu0
    %v453 = vadd.f32 %v277, %v452
    %v454 = vpop.f32.mrb[0].mxu0
    %v455 = vadd.f32 %v281, %v454
    %456 = vmatprep.mubr.bf16.mxu0 0
    %457 = vmatmul.mubr.bf16.gmra.mrb[0].mxu0 %v254
    %v458 = vpop.f32.mrb[0].mxu0
    %v459 = vadd.f32 %v277, %v458
    %v460 = vpop.f32.mrb[0].mxu0
    %v461 = vadd.f32 %v281, %v460
    %v462 = vpop.f32.mrb[0].mxu0
    %v463 = vadd.f32 %v277, %v462
    %v464 = vpop.f32.mrb[0].mxu0
    %v465 = vadd.f32 %v281, %v464
    %466 = vmatprep.mubr.bf16.mxu0 0
    %467 = vmatmul.mubr.bf16.gmra.mrb[0].mxu0 %v255
    %v468 = vpop.f32.mrb[0].mxu0
    %v469 = vadd.f32 %v277, %v468
    %v470 = vpop.f32.mrb[0].mxu0
    %v471 = vadd.f32 %v281, %v470
    %v472 = vpop.f32.mrb[0].mxu0
    %v473 = vadd.f32 %v277, %v472
    %v474 = vpop.f32.mrb[0].mxu0
    %v475 = vadd.f32 %v281, %v474
    %476 = vdwg.mxu0
    %477 = vst [vmem:[#allocation8] sm:$0xff] %v399
    %478 = vst [vmem:[#allocation8 + $0x8] sm:$0xff] %v401
    %479 = vst [vmem:[#allocation8 + $0x10] sm:$0xff] %v403
    %480 = vst [vmem:[#allocation8 + $0x18] sm:$0xff] %v405
    %481 = vst [vmem:[#allocation8 + $0x20] sm:$0xff] %v409
    %482 = vst [vmem:[#allocation8 + $0x28] sm:$0xff] %v411
    %483 = vst [vmem:[#allocation8 + $0x30] sm:$0xff] %v413
    %484 = vst [vmem:[#allocation8 + $0x38] sm:$0xff] %v415
    %485 = vst [vmem:[#allocation8 + $0x40] sm:$0xff] %v419
    %486 = vst [vmem:[#allocation8 + $0x48] sm:$0xff] %v421
    %487 = vst [vmem:[#allocation8 + $0x50] sm:$0xff] %v423
    %488 = vst [vmem:[#allocation8 + $0x58] sm:$0xff] %v425
    %489 = vst [vmem:[#allocation8 + $0x60] sm:$0xff] %v429
    %490 = vst [vmem:[#allocation8 + $0x68] sm:$0xff] %v431
    %491 = vst [vmem:[#allocation8 + $0x70] sm:$0xff] %v433
    %492 = vst [vmem:[#allocation8 + $0x78] sm:$0xff] %v435
    %493 = vst [vmem:[#allocation8 + $0x80] sm:$0xff] %v439
    %494 = vst [vmem:[#allocation8 + $0x88] sm:$0xff] %v441
    %495 = vst [vmem:[#allocation8 + $0x90] sm:$0xff] %v443
    %496 = vst [vmem:[#allocation8 + $0x98] sm:$0xff] %v445
    %497 = vst [vmem:[#allocation8 + $0xa0] sm:$0xff] %v449
    %498 = vst [vmem:[#allocation8 + $0xa8] sm:$0xff] %v451
    %499 = vst [vmem:[#allocation8 + $0xb0] sm:$0xff] %v453
    %500 = vst [vmem:[#allocation8 + $0xb8] sm:$0xff] %v455
    %501 = vst [vmem:[#allocation8 + $0xc0] sm:$0xff] %v459
    %502 = vst [vmem:[#allocation8 + $0xc8] sm:$0xff] %v461
    %503 = vst [vmem:[#allocation8 + $0xd0] sm:$0xff] %v463
    %504 = vst [vmem:[#allocation8 + $0xd8] sm:$0xff] %v465
    %505 = vst [vmem:[#allocation8 + $0xe0] sm:$0xff] %v469
    %506 = vst [vmem:[#allocation8 + $0xe8] sm:$0xff] %v471
    %507 = vst [vmem:[#allocation8 + $0xf0] sm:$0xff] %v473
    %508 = vst [vmem:[#allocation8 + $0xf8] sm:$0xff] %v475
    // Predicated region
    $region34: #{tpu_custom_call.1} parent=1 // pred_check
      _
    $region35: #{tpu_custom_call.1} parent=1 // pred_check_branch
      %510 = sbr.rel (0) target = $region37
    $region36: #{tpu_custom_call.1} parent=1 // pred_region
      %s512 = ssub.s32 4096, 512
      %513 = vsyncadd [#allocation4], %s512
      %s514 = sshll.u32 [#allocation8], 4
      %s515 = int_to_ptr.vmem [resolvable:$true] %s514
      %520 = dma.vmem_to_hbm [thread:$0]  %s515, 512, %s5, [#allocation4], 256, 256, 16
    $region37: #{tpu_custom_call.1} parent=1 // pred_fallthru
      _
    // Predicated region
    $region38: #{tpu_custom_call.1} parent=1 // pred_check
      _
    $region39: #{tpu_custom_call.1} parent=1 // pred_check_branch
      %522 = sbr.rel (0) target = $region41
    $region40: #{tpu_custom_call.1} parent=1 // pred_region
      %523 = dma.done [#allocation4], 4096
    $region41: #{tpu_custom_call.1} parent=1 // pred_fallthru
      _
    %524 = vsyncpa [#allocation3], 1
    %525 = vsyncpa [#allocation6], 1
    %526 = vsyncpa [#allocation4], 1

</llo_original>
